<compile_context>
chip_gen: v7x
topology: tpu7x:2x2x1
jax: 0.10.0
libtpu: 0.0.40
codegen_flags: <defaults>
</compile_context>

<pallas_src>
import jax
import jax.numpy as jnp
from jax.experimental import pallas as pl
from jax.experimental.pallas import tpu as pltpu

_LANE = 128
_SUBLANE = 8


def _round_up(v, m):
    return ((v + m - 1) // m) * m


def _vmem_capacity_bytes():
    # Per-generation VMEM (v5e/v6e: 128 MiB, v7x: 64 MiB/TC). Conservative fallback.
    try:
        return int(pltpu.get_tpu_info().vmem_capacity_bytes)
    except Exception:
        return 64 * 1024 * 1024


# ---------------------------------------------------------------------------
# Kernels
# ---------------------------------------------------------------------------

def _resnet_fc_kernel_shortcut(x_ref, w0_ref, b0_ref, w1_ref, b1_ref, ws_ref, o_ref):
    # out = shortcut(x) + fc_1(relu(fc_0(relu(x))))
    x = x_ref[...]                                    # streamed in input dtype
    xf = x.astype(jnp.float32)                        # ReLU in f32 (VPU-safe on v5e)
    h = jnp.maximum(xf, 0.0).astype(w0_ref.dtype)
    net = jnp.dot(h, w0_ref[...], preferred_element_type=jnp.float32) + b0_ref[...]
    h2 = jnp.maximum(net, 0.0).astype(w1_ref.dtype)
    dx = jnp.dot(h2, w1_ref[...], preferred_element_type=jnp.float32) + b1_ref[...]
    xs = jnp.dot(x.astype(ws_ref.dtype), ws_ref[...],
                 preferred_element_type=jnp.float32)
    o_ref[...] = (xs + dx).astype(o_ref.dtype)


def _resnet_fc_kernel_identity(x_ref, w0_ref, b0_ref, w1_ref, b1_ref, o_ref):
    # size_in == size_out: shortcut is identity
    x = x_ref[...]
    xf = x.astype(jnp.float32)
    h = jnp.maximum(xf, 0.0).astype(w0_ref.dtype)
    net = jnp.dot(h, w0_ref[...], preferred_element_type=jnp.float32) + b0_ref[...]
    h2 = jnp.maximum(net, 0.0).astype(w1_ref.dtype)
    dx = jnp.dot(h2, w1_ref[...], preferred_element_type=jnp.float32) + b1_ref[...]
    o_ref[...] = (xf + dx).astype(o_ref.dtype)


# ---------------------------------------------------------------------------
# Param prep (one-time, outside the hot path)
# ---------------------------------------------------------------------------

def prepare_resnet_fc_params(params, compute_dtype=jnp.bfloat16):
    """Cast MXU operands (weights) to compute_dtype once; biases stay f32 and
    are added after the f32 accumulation."""
    out = {
        "w0": jnp.asarray(params["w0"], compute_dtype),
        "b0": jnp.asarray(params["b0"], jnp.float32).reshape(1, -1),
        "w1": jnp.asarray(params["w1"], compute_dtype),
        "b1": jnp.asarray(params["b1"], jnp.float32).reshape(1, -1),
    }
    if "ws" in params:
        out["ws"] = jnp.asarray(params["ws"], compute_dtype)
    return out


# ---------------------------------------------------------------------------
# Wrapper
# ---------------------------------------------------------------------------

def _choose_tile_b(n, size_in, size_h, size_out, has_shortcut, xbytes, obytes, wbytes):
    """Largest batch tile that fits the per-generation VMEM budget."""
    cap = _vmem_capacity_bytes()
    budget = int(cap * 0.6)                           # real headroom (v7x: ~38 of 64 MiB)
    in_l = _round_up(size_in, _LANE)
    h_l = _round_up(size_h, _LANE)
    out_l = _round_up(size_out, _LANE)
    weight_vmem = (in_l * h_l + h_l * out_l
                   + (in_l * out_l if has_shortcut else 0)) * wbytes
    weight_vmem += _SUBLANE * (h_l + out_l) * 4       # bias vreg tiles
    # per-row footprint: double-buffered x/out tiles + f32 intermediates
    row_bytes = 2 * in_l * xbytes + 2 * out_l * obytes + (in_l + h_l + 2 * out_l) * 4
    avail = max(budget - weight_vmem, row_bytes * _SUBLANE)
    tb = int(min(avail // row_bytes, 1024))           # no multi-step clamp (1-TC chips)
    tb = max(_SUBLANE, (tb // _SUBLANE) * _SUBLANE)
    if tb >= 256:
        tb = (tb // 256) * 256                        # MXU-friendly M on v6e/v7x
    elif tb >= _LANE:
        tb = (tb // _LANE) * _LANE
    tb = min(tb, _round_up(n, _SUBLANE))
    return tb, weight_vmem


def resnet_fc_forward(x, params, *, out_dtype=None, tile_b=None):
    """x: (N, size_in). params: dict of pre-transposed (in, out) weights, e.g. from
    prepare_resnet_fc_params (the weight dtype defines the MXU operand dtype).
    Output dtype defaults to x.dtype."""
    n, size_in = x.shape
    size_h = params["w0"].shape[1]
    size_out = params["w1"].shape[1]
    has_shortcut = "ws" in params
    if out_dtype is None:
        out_dtype = x.dtype

    b0 = params["b0"].reshape(1, size_h)
    b1 = params["b1"].reshape(1, size_out)

    xbytes = jnp.dtype(x.dtype).itemsize
    obytes = jnp.dtype(out_dtype).itemsize
    wbytes = jnp.dtype(params["w0"].dtype).itemsize

    auto_tb, weight_vmem = _choose_tile_b(n, size_in, size_h, size_out,
                                          has_shortcut, xbytes, obytes, wbytes)
    if tile_b is None:
        tile_b = auto_tb
    # TODO(synk): if resident weights alone exceed ~25-30 MiB (v7x's 64 MiB VMEM/TC),
    # add a K-tiled "arbitrary" reduction axis with an f32 VMEM accumulator instead
    # of keeping full weights single-buffered.

    # No wrapper pad of x and no post-kernel slice: Pallas masks the ragged last
    # batch block (row-independent math, so OOB garbage rows never touch valid rows
    # and their stores are dropped).
    grid = (pl.cdiv(n, tile_b),)

    wmode = pl.Buffered(1)  # grid-invariant operands -> single-buffered (saves VMEM)
    x_spec = pl.BlockSpec((tile_b, size_in), lambda i: (i, 0))
    w0_spec = pl.BlockSpec((size_in, size_h), lambda i: (0, 0), pipeline_mode=wmode)
    b0_spec = pl.BlockSpec((1, size_h), lambda i: (0, 0), pipeline_mode=wmode)
    w1_spec = pl.BlockSpec((size_h, size_out), lambda i: (0, 0), pipeline_mode=wmode)
    b1_spec = pl.BlockSpec((1, size_out), lambda i: (0, 0), pipeline_mode=wmode)
    out_spec = pl.BlockSpec((tile_b, size_out), lambda i: (i, 0))

    if has_shortcut:
        ws_spec = pl.BlockSpec((size_in, size_out), lambda i: (0, 0), pipeline_mode=wmode)
        kernel = _resnet_fc_kernel_shortcut
        in_specs = [x_spec, w0_spec, b0_spec, w1_spec, b1_spec, ws_spec]
        args = (x, params["w0"], b0, params["w1"], b1, params["ws"])
    else:
        kernel = _resnet_fc_kernel_identity
        in_specs = [x_spec, w0_spec, b0_spec, w1_spec, b1_spec]
        args = (x, params["w0"], b0, params["w1"], b1)

    # Scoped VMEM: cover the actual footprint, but leave headroom on v7x (0.75*cap).
    in_l = _round_up(size_in, _LANE)
    h_l = _round_up(size_h, _LANE)
    out_l = _round_up(size_out, _LANE)
    act_bytes = tile_b * (2 * in_l * xbytes + 2 * out_l * obytes)
    interm_bytes = tile_b * (in_l + h_l + 2 * out_l) * 4
    vmem_need = weight_vmem + act_bytes + interm_bytes
    cap = _vmem_capacity_bytes()
    vmem_limit = int(min(max(32 * 1024 * 1024, vmem_need * 1.3),
                         cap * 0.75, 128 * 1024 * 1024))

    flops = 2 * n * (size_in * size_h + size_h * size_out
                     + (size_in * size_out if has_shortcut else 0))
    bytes_accessed = (n * size_in * xbytes + n * size_out * obytes
                      + (size_in * size_h + size_h * size_out
                         + (size_in * size_out if has_shortcut else 0)) * wbytes
                      + (size_h + size_out) * 4)
    cost = pl.CostEstimate(flops=flops, transcendentals=0,
                           bytes_accessed=bytes_accessed)

    return pl.pallas_call(
        kernel,
        out_shape=jax.ShapeDtypeStruct((n, size_out), out_dtype),
        grid_spec=pltpu.PrefetchScalarGridSpec(
            num_scalar_prefetch=0,
            grid=grid,
            in_specs=in_specs,
            out_specs=out_spec,
        ),
        compiler_params=pltpu.CompilerParams(
            # "parallel" lets Mosaic shard the batch grid across the 2 TCs on v7x;
            # it is a no-op on single-TC v5e/v6e.
            dimension_semantics=("parallel",),
            vmem_limit_bytes=vmem_limit,
        ),
        cost_estimate=cost,
    )(*args)


# ---------------------------------------------------------------------------
# Params / reference
# ---------------------------------------------------------------------------

def init_resnet_fc_params(key, size_in, size_out=None, size_h=None):
    """Synthetic init matching the PyTorch module's shapes.

    PyTorch Linear weight is (out, in); we store the transpose (in, out).
    fc_1.weight is zero-initialized (nn.init.zeros_); its bias keeps a random init.
    """
    if size_out is None:
        size_out = size_in
    if size_h is None:
        size_h = min(size_in, size_out)

    k0, k1, k2, k3 = jax.random.split(key, 4)
    params = {
        "w0": jax.random.normal(k0, (size_in, size_h), jnp.float32) * 0.1,
        "b0": jax.random.normal(k1, (1, size_h), jnp.float32) * 0.1,
        "w1": jnp.zeros((size_h, size_out), jnp.float32),   # nn.init.zeros_
        "b1": jax.random.normal(k2, (1, size_out), jnp.float32) * 0.1,
    }
    if size_in != size_out:
        params["ws"] = jax.random.normal(k3, (size_in, size_out), jnp.float32) * 0.1
    return params


def resnet_fc_reference(x, params):
    h = jnp.maximum(x, 0.0)
    net = h @ params["w0"].astype(jnp.float32) + params["b0"].astype(jnp.float32)
    dx = (jnp.maximum(net, 0.0) @ params["w1"].astype(jnp.float32)
          + params["b1"].astype(jnp.float32))
    xs = x @ params["ws"].astype(jnp.float32) if "ws" in params else x
    return xs + dx


if __name__ == "__main__":
    key = jax.random.PRNGKey(0)
    kx, kp, kw = jax.random.split(key, 3)

    # Config 1: size_in != size_out -> linear shortcut path.
    size_in, size_out, size_h = 32, 64, 32
    batch = 16
    x = jax.random.normal(kx, (batch, size_in), jnp.float32)
    params = init_resnet_fc_params(kp, size_in, size_out, size_h)
    ref = resnet_fc_reference(x, params)

    # f32 MXU operands (params already f32): exact check, no pads/slices anywhere.
    out_f32 = jax.block_until_ready(resnet_fc_forward(x, params))
    assert out_f32.shape == (batch, size_out)
    assert jnp.allclose(out_f32, ref, atol=1e-5, rtol=1e-5), "f32 shortcut-path mismatch"

    # bf16 streaming: bf16 x, bf16 weights (prepped once, hoisted), bf16 output.
    params_bf16 = prepare_resnet_fc_params(params, jnp.bfloat16)
    out_bf16 = jax.block_until_ready(
        resnet_fc_forward(x.astype(jnp.bfloat16), params_bf16, out_dtype=jnp.bfloat16))
    assert out_bf16.dtype == jnp.bfloat16
    assert jnp.allclose(out_bf16.astype(jnp.float32), ref, atol=6e-2, rtol=6e-2), \
        "bf16 shortcut-path mismatch"

    # Non-zero fc_1 weight (exercise both matmuls) + ragged batch (n % tile != 0),
    # which checks the masked last grid block that replaced the wrapper pad/slice.
    params_full = dict(params)
    params_full["w1"] = jax.random.normal(kw, (size_h, size_out), jnp.float32) * 0.1
    x_rag = jax.random.normal(kx, (13, size_in), jnp.float32)
    ref_rag = resnet_fc_reference(x_rag, params_full)
    out_rag = jax.block_until_ready(resnet_fc_forward(x_rag, params_full))
    assert out_rag.shape == (13, size_out)
    assert jnp.allclose(out_rag, ref_rag, atol=1e-5, rtol=1e-5), "ragged-batch mismatch"

    # Config 2: size_in == size_out -> identity shortcut path.
    params_id = init_resnet_fc_params(kp, size_in)
    ref_id = resnet_fc_reference(x, params_id)
    out_id = jax.block_until_ready(resnet_fc_forward(x, params_id))
    assert out_id.shape == (batch, size_in)
    assert jnp.allclose(out_id, ref_id, atol=1e-5, rtol=1e-5), "identity-path mismatch"

    print("KERNEL_OK")
</pallas_src>

<mosaic_0001>
module attributes {stable_mosaic.version = 11 : i64} {
  func.func @_resnet_fc_kernel_shortcut(%arg0: i32, %arg1: memref<16x32xf32, #tpu.memory_space<vmem>>, %arg2: memref<32x32xf32, #tpu.memory_space<vmem>>, %arg3: memref<1x32xf32, #tpu.memory_space<vmem>>, %arg4: memref<32x64xf32, #tpu.memory_space<vmem>>, %arg5: memref<1x64xf32, #tpu.memory_space<vmem>>, %arg6: memref<32x64xf32, #tpu.memory_space<vmem>>, %arg7: memref<16x64xf32, #tpu.memory_space<vmem>>) attributes {dimension_semantics = [#tpu.dimension_semantics<parallel>], iteration_bounds = array<i64: 1>, scalar_prefetch = 0 : i64, scratch_operands = 0 : i64, tpu.core_type = #tpu.core_type<tc>, window_params = [{transform_indices = @transform_0, window_bounds = array<i64: 16, 32>}, {pipeline_mode = #tpu.pipeline_mode<synchronous>, transform_indices = @transform_1, window_bounds = array<i64: 32, 32>}, {pipeline_mode = #tpu.pipeline_mode<synchronous>, transform_indices = @transform_2, window_bounds = array<i64: 1, 32>}, {pipeline_mode = #tpu.pipeline_mode<synchronous>, transform_indices = @transform_3, window_bounds = array<i64: 32, 64>}, {pipeline_mode = #tpu.pipeline_mode<synchronous>, transform_indices = @transform_4, window_bounds = array<i64: 1, 64>}, {pipeline_mode = #tpu.pipeline_mode<synchronous>, transform_indices = @transform_5, window_bounds = array<i64: 32, 64>}, {transform_indices = @transform_6, window_bounds = array<i64: 16, 64>}]} {
    %c0 = arith.constant 0 : index
    %c0_0 = arith.constant 0 : index
    %0 = vector.load %arg1[%c0, %c0_0] : memref<16x32xf32, #tpu.memory_space<vmem>>, vector<16x32xf32>
    %cst = arith.constant 0.000000e+00 : f32
    %1 = vector.broadcast %cst : f32 to vector<16x32xf32>
    %2 = arith.maximumf %0, %1 : vector<16x32xf32>
    %c0_1 = arith.constant 0 : index
    %c0_2 = arith.constant 0 : index
    %3 = vector.load %arg2[%c0_1, %c0_2] : memref<32x32xf32, #tpu.memory_space<vmem>>, vector<32x32xf32>
    %cst_3 = arith.constant dense<0.000000e+00> : vector<16x32xf32>
    %4 = tpu.matmul %2, %3, %cst_3 {dimension_numbers = #tpu.dot_dimension_numbers<[1], [0], [0], [1], [0, 0, 1, 1], [], []>} : vector<16x32xf32>, vector<32x32xf32>, vector<16x32xf32> -> vector<16x32xf32>
    %c0_4 = arith.constant 0 : index
    %c0_5 = arith.constant 0 : index
    %5 = vector.load %arg3[%c0_4, %c0_5] : memref<1x32xf32, #tpu.memory_space<vmem>>, vector<1x32xf32>
    %6 = vector.broadcast %5 : vector<1x32xf32> to vector<16x32xf32>
    %7 = arith.addf %4, %6 : vector<16x32xf32>
    %cst_6 = arith.constant 0.000000e+00 : f32
    %8 = vector.broadcast %cst_6 : f32 to vector<16x32xf32>
    %9 = arith.maximumf %7, %8 : vector<16x32xf32>
    %c0_7 = arith.constant 0 : index
    %c0_8 = arith.constant 0 : index
    %10 = vector.load %arg4[%c0_7, %c0_8] : memref<32x64xf32, #tpu.memory_space<vmem>>, vector<32x64xf32>
    %cst_9 = arith.constant dense<0.000000e+00> : vector<16x64xf32>
    %11 = tpu.matmul %9, %10, %cst_9 {dimension_numbers = #tpu.dot_dimension_numbers<[1], [0], [0], [1], [0, 0, 1, 1], [], []>} : vector<16x32xf32>, vector<32x64xf32>, vector<16x64xf32> -> vector<16x64xf32>
    %c0_10 = arith.constant 0 : index
    %c0_11 = arith.constant 0 : index
    %12 = vector.load %arg5[%c0_10, %c0_11] : memref<1x64xf32, #tpu.memory_space<vmem>>, vector<1x64xf32>
    %13 = vector.broadcast %12 : vector<1x64xf32> to vector<16x64xf32>
    %14 = arith.addf %11, %13 : vector<16x64xf32>
    %c0_12 = arith.constant 0 : index
    %c0_13 = arith.constant 0 : index
    %15 = vector.load %arg6[%c0_12, %c0_13] : memref<32x64xf32, #tpu.memory_space<vmem>>, vector<32x64xf32>
    %cst_14 = arith.constant dense<0.000000e+00> : vector<16x64xf32>
    %16 = tpu.matmul %0, %15, %cst_14 {dimension_numbers = #tpu.dot_dimension_numbers<[1], [0], [0], [1], [0, 0, 1, 1], [], []>} : vector<16x32xf32>, vector<32x64xf32>, vector<16x64xf32> -> vector<16x64xf32>
    %17 = arith.addf %16, %14 : vector<16x64xf32>
    %c0_15 = arith.constant 0 : index
    %c0_16 = arith.constant 0 : index
    %18 = vector.load %arg7[%c0_15, %c0_16] : memref<16x64xf32, #tpu.memory_space<vmem>>, vector<16x64xf32>
    tpu.vector_store %arg7[%c0_15, %c0_16], %17 {strides = array<i32>} : memref<16x64xf32, #tpu.memory_space<vmem>>, vector<16x64xf32>,
    return
  }
  func.func @transform_0(%arg0: i32) -> (i32, i32) {
    %c0_i32 = arith.constant 0 : i32
    %c0_i32_0 = arith.constant 0 : i32
    return %arg0, %c0_i32 : i32, i32
  }
  func.func @transform_1(%arg0: i32) -> (i32, i32) {
    %c0_i32 = arith.constant 0 : i32
    %c0_i32_0 = arith.constant 0 : i32
    %c0_i32_1 = arith.constant 0 : i32
    return %c0_i32, %c0_i32_0 : i32, i32
  }
  func.func @transform_2(%arg0: i32) -> (i32, i32) {
    %c0_i32 = arith.constant 0 : i32
    %c0_i32_0 = arith.constant 0 : i32
    %c0_i32_1 = arith.constant 0 : i32
    return %c0_i32, %c0_i32_0 : i32, i32
  }
  func.func @transform_3(%arg0: i32) -> (i32, i32) {
    %c0_i32 = arith.constant 0 : i32
    %c0_i32_0 = arith.constant 0 : i32
    %c0_i32_1 = arith.constant 0 : i32
    return %c0_i32, %c0_i32_0 : i32, i32
  }
  func.func @transform_4(%arg0: i32) -> (i32, i32) {
    %c0_i32 = arith.constant 0 : i32
    %c0_i32_0 = arith.constant 0 : i32
    %c0_i32_1 = arith.constant 0 : i32
    return %c0_i32, %c0_i32_0 : i32, i32
  }
  func.func @transform_5(%arg0: i32) -> (i32, i32) {
    %c0_i32 = arith.constant 0 : i32
    %c0_i32_0 = arith.constant 0 : i32
    %c0_i32_1 = arith.constant 0 : i32
    return %c0_i32, %c0_i32_0 : i32, i32
  }
  func.func @transform_6(%arg0: i32) -> (i32, i32) {
    %c0_i32 = arith.constant 0 : i32
    %c0_i32_0 = arith.constant 0 : i32
    return %arg0, %c0_i32 : i32, i32
  }
}

</mosaic_0001>

<llo_original>
// kernel: tpu_custom_call.1
$region0: #{tpu_custom_call.1}
  #allocation0 [shape = 'u32[]', space=smem, size = 0x4, offset = 0x4, fixed_abs, tag = 'smem constant byte address 0x4 - core index']
  #allocation1 [shape = 'u32[144,128]{1,0:T(1,128)}', space=vmem, size = 0x12000, scoped, tag = 'internal scratch']
  %s0 = inlined_call_operand.hbm [shape: f32[16,32], index: 0, kind: input, shape index: {}]
  %s1 = inlined_call_operand.hbm [shape: f32[32,32], index: 1, kind: input, shape index: {}]
  %s2 = inlined_call_operand.vmem [shape: f32[1,32], index: 2, kind: input, shape index: {}]
  %s3 = inlined_call_operand.hbm [shape: f32[32,64], index: 3, kind: input, shape index: {}]
  %s4 = inlined_call_operand.vmem [shape: f32[1,64], index: 4, kind: input, shape index: {}]
  %s5 = inlined_call_operand.hbm [shape: f32[32,64], index: 5, kind: input, shape index: {}]
  %s6 = inlined_call_operand.hbm [shape: f32[16,64], index: 6, kind: output, shape index: {}]
  %s7 = sld [smem:[#allocation0]]
  $region50: #{tpu_custom_call.1} parent=0
    _
  %s9 = ssub.s32 1, %s7
  %s10 = scalar_select 0, %s9, %s7
  $region1: #{tpu_custom_call.1} parent=0
    #allocation2 [shape = 'u8[8192]{0}', space=vmem, size = 0x2000, scoped, tag = 'input window, operand 0, single buffered']
    #allocation3 [shape = 's32[1]{0}', space=sflag, size = 0x4, scoped, tag = 'scoped memory for tpu_custom_call.1']
    #allocation4 [shape = 's32[1]{0}', space=sflag, size = 0x4, scoped, tag = 'scoped memory for tpu_custom_call.1']
    #allocation5 [shape = 'u8[16384]{0}', space=vmem, size = 0x4000, scoped, tag = 'input window, operand 1, single buffered']
    #allocation6 [shape = 's32[1]{0}', space=sflag, size = 0x4, scoped, tag = 'scoped memory for tpu_custom_call.1']
    #allocation7 [shape = 'u8[16384]{0}', space=vmem, size = 0x4000, scoped, tag = 'input window, operand 3, single buffered']
    #allocation8 [shape = 'u8[16384]{0}', space=vmem, size = 0x4000, scoped, tag = 'input window, operand 5, single buffered']
    #allocation9 [shape = 's32[1]{0}', space=sflag, size = 0x4, scoped, tag = 'scoped memory for tpu_custom_call.1']
    #allocation10 [shape = 'u8[8192]{0}', space=vmem, size = 0x2000, scoped, tag = 'output window, operand 0, single buffered']
    %11 = vsyncpa [#allocation3], 0
    %12 = vsyncpa [#allocation6], 0
    %13 = vsyncpa [#allocation9], 0
    %14 = vsyncpa [#allocation4], 0
    // Predicated region
    $region2: #{tpu_custom_call.1} parent=1 // pred_check
      _
    $region3: #{tpu_custom_call.1} parent=1 // pred_check_branch
      %16 = sbr.rel (0) target = $region5
    $region4: #{tpu_custom_call.1} parent=1 // pred_region
      %s18 = ssub.s32 256, 256
      %19 = vsyncadd [#allocation3], %s18
      %s20 = sshll.u32 [#allocation2], 4
      %s21 = int_to_ptr.vmem [resolvable:$true] %s20
      %26 = dma.hbm_to_vmem [thread:$0]  %s0, 256, %s21, [#allocation3], 128, 128, 8
    $region5: #{tpu_custom_call.1} parent=1 // pred_fallthru
      _
    // Predicated region
    $region6: #{tpu_custom_call.1} parent=1 // pred_check
      _
    $region7: #{tpu_custom_call.1} parent=1 // pred_check_branch
      %28 = sbr.rel (0) target = $region9
    $region8: #{tpu_custom_call.1} parent=1 // pred_region
      %s30 = ssub.s32 512, 512
      %31 = vsyncadd [#allocation6], %s30
      %s32 = sshll.u32 [#allocation5], 4
      %s33 = int_to_ptr.vmem [resolvable:$true] %s32
      %38 = dma.hbm_to_vmem [thread:$0]  %s1, 512, %s33, [#allocation6], 128, 128, 8
    $region9: #{tpu_custom_call.1} parent=1 // pred_fallthru
      _
    // Predicated region
    $region10: #{tpu_custom_call.1} parent=1 // pred_check
      _
    $region11: #{tpu_custom_call.1} parent=1 // pred_check_branch
      %40 = sbr.rel (0) target = $region13
    $region12: #{tpu_custom_call.1} parent=1 // pred_region
      _
    $region13: #{tpu_custom_call.1} parent=1 // pred_fallthru
      _
    // Predicated region
    $region14: #{tpu_custom_call.1} parent=1 // pred_check
      _
    $region15: #{tpu_custom_call.1} parent=1 // pred_check_branch
      %42 = sbr.rel (0) target = $region17
    $region16: #{tpu_custom_call.1} parent=1 // pred_region
      %s44 = ssub.s32 512, 512
      %45 = vsyncadd [#allocation6], %s44
      %s46 = sshll.u32 [#allocation7], 4
      %s47 = int_to_ptr.vmem [resolvable:$true] %s46
      %52 = dma.hbm_to_vmem [thread:$0]  %s3, 512, %s47, [#allocation6], 128, 128, 8
    $region17: #{tpu_custom_call.1} parent=1 // pred_fallthru
      _
    // Predicated region
    $region18: #{tpu_custom_call.1} parent=1 // pred_check
      _
    $region19: #{tpu_custom_call.1} parent=1 // pred_check_branch
      %54 = sbr.rel (0) target = $region21
    $region20: #{tpu_custom_call.1} parent=1 // pred_region
      _
    $region21: #{tpu_custom_call.1} parent=1 // pred_fallthru
      _
    // Predicated region
    $region22: #{tpu_custom_call.1} parent=1 // pred_check
      _
    $region23: #{tpu_custom_call.1} parent=1 // pred_check_branch
      %56 = sbr.rel (0) target = $region25
    $region24: #{tpu_custom_call.1} parent=1 // pred_region
      %s58 = ssub.s32 512, 512
      %59 = vsyncadd [#allocation9], %s58
      %s60 = sshll.u32 [#allocation8], 4
      %s61 = int_to_ptr.vmem [resolvable:$true] %s60
      %66 = dma.hbm_to_vmem [thread:$0]  %s5, 512, %s61, [#allocation9], 128, 128, 8
    $region25: #{tpu_custom_call.1} parent=1 // pred_fallthru
      _
    // Predicated region
    $region26: #{tpu_custom_call.1} parent=1 // pred_check
      _
    $region27: #{tpu_custom_call.1} parent=1 // pred_check_branch
      %68 = sbr.rel (0) target = $region29
    $region28: #{tpu_custom_call.1} parent=1 // pred_region
      %69 = dma.done [#allocation3], 256
    $region29: #{tpu_custom_call.1} parent=1 // pred_fallthru
      _
    // Predicated region
    $region30: #{tpu_custom_call.1} parent=1 // pred_check
      _
    $region31: #{tpu_custom_call.1} parent=1 // pred_check_branch
      %71 = sbr.rel (0) target = $region33
    $region32: #{tpu_custom_call.1} parent=1 // pred_region
      %72 = dma.done [#allocation6], 512
    $region33: #{tpu_custom_call.1} parent=1 // pred_fallthru
      _
    // Predicated region
    $region34: #{tpu_custom_call.1} parent=1 // pred_check
      _
    $region35: #{tpu_custom_call.1} parent=1 // pred_check_branch
      %74 = sbr.rel (0) target = $region37
    $region36: #{tpu_custom_call.1} parent=1 // pred_region
      %75 = dma.done [#allocation6], 512
    $region37: #{tpu_custom_call.1} parent=1 // pred_fallthru
      _
    // Predicated region
    $region38: #{tpu_custom_call.1} parent=1 // pred_check
      _
    $region39: #{tpu_custom_call.1} parent=1 // pred_check_branch
      %77 = sbr.rel (0) target = $region41
    $region40: #{tpu_custom_call.1} parent=1 // pred_region
      %78 = dma.done [#allocation9], 512
    $region41: #{tpu_custom_call.1} parent=1 // pred_fallthru
      _
    %v79 = vld [vmem:[#allocation2] sm:$0xff]
    %v80 = vld [vmem:[#allocation2 + $0x8] sm:$0xff]
    %v81 = vmax.f32 %v79, 0.0
    %v82 = vmax.f32 %v80, 0.0
    %v83 = vld [vmem:[#allocation5] sm:$0xff]
    %v84 = vld [vmem:[#allocation5 + $0x8] sm:$0xff]
    %v85 = vld [vmem:[#allocation5 + $0x10] sm:$0xff]
    %v86 = vld [vmem:[#allocation5 + $0x18] sm:$0xff]
    %v87 = vld [vmem:[%s2] sm:$0x1]
    %v89 = vlaneseq
    %v90 = vshrl.u32 %v89, 7
    %v91 = vsub.s32 0, %v90
    %v92 = vrot.slane %v87, %v91
    %vm94 = vcmask 261120
    %v96 = vsel %vm94, %v81, 0
    %v99 = vsel %vm94, %v82, 0
    %101 = vmatprep.subr.mxu0 0.0
    %102 = vmatpush1.msra.mxu0 %v83
    %103 = vmatprep.subr.mxu0 0.0
    %104 = vmatpush1.msra.mxu0 %v84
    %105 = vmatprep.subr.mxu0 0.0
    %106 = vmatpush1.msra.mxu0 %v85
    %107 = vmatprep.subr.mxu0 0.0
    %108 = vmatpush1.msra.mxu0 %v86
    %109 = vmatprep.subr.mxu0 0.0
    %110 = vmatpush1.msra.mxu0 0.0
    %111 = vmatprep.subr.mxu0 0.0
    %112 = vmatpush1.msra.mxu0 0.0
    %113 = vmatprep.subr.mxu0 0.0
    %114 = vmatpush1.msra.mxu0 0.0
    %115 = vmatprep.subr.mxu0 0.0
    %116 = vmatpush1.msra.mxu0 0.0
    %117 = vmatprep.subr.mxu0 0.0
    %118 = vmatpush1.msra.mxu0 0.0
    %119 = vmatprep.subr.mxu0 0.0
    %120 = vmatpush1.msra.mxu0 0.0
    %121 = vmatprep.subr.mxu0 0.0
    %122 = vmatpush1.msra.mxu0 0.0
    %123 = vmatprep.subr.mxu0 0.0
    %124 = vmatpush1.msra.mxu0 0.0
    %125 = vmatprep.subr.mxu0 0.0
    %126 = vmatpush1.msra.mxu0 0.0
    %127 = vmatprep.subr.mxu0 0.0
    %128 = vmatpush1.msra.mxu0 0.0
    %129 = vmatprep.subr.mxu0 0.0
    %130 = vmatpush1.msra.mxu0 0.0
    %131 = vmatprep.subr.mxu0 0.0
    %132 = vmatpush1.msra.mxu0 0.0
    %133 = vmatprep.subr.mxu0 0.0
    %134 = vmatpush1.msra.mxu0 0.0
    %135 = vmatprep.subr.mxu0 0.0
    %136 = vmatpush1.msra.mxu0 0.0
    %137 = vmatprep.subr.mxu0 0.0
    %138 = vmatpush1.msra.mxu0 0.0
    %139 = vmatprep.subr.mxu0 0.0
    %140 = vmatpush1.msra.mxu0 0.0
    %141 = vmatprep.subr.mxu0 0.0
    %142 = vmatpush1.msra.mxu0 0.0
    %143 = vmatprep.subr.mxu0 0.0
    %144 = vmatpush1.msra.mxu0 0.0
    %145 = vmatprep.subr.mxu0 0.0
    %146 = vmatpush1.msra.mxu0 0.0
    %147 = vmatprep.subr.mxu0 0.0
    %148 = vmatpush1.msra.mxu0 0.0
    %149 = vmatprep.subr.mxu0 0.0
    %150 = vmatpush1.msra.mxu0 0.0
    %151 = vmatprep.subr.mxu0 0.0
    %152 = vmatpush1.msra.mxu0 0.0
    %153 = vmatprep.subr.mxu0 0.0
    %154 = vmatpush1.msra.mxu0 0.0
    %155 = vmatprep.subr.mxu0 0.0
    %156 = vmatpush1.msra.mxu0 0.0
    %157 = vmatprep.subr.mxu0 0.0
    %158 = vmatpush1.msra.mxu0 0.0
    %159 = vmatprep.subr.mxu0 0.0
    %160 = vmatpush1.msra.mxu0 0.0
    %161 = vmatprep.subr.mxu0 0.0
    %162 = vmatpush1.msra.mxu0 0.0
    %163 = vmatprep.subr.mxu0 0.0
    %164 = vmatpush1.msra.mxu0 0.0
    %165 = vmatprep.mubr.f32.mxu0 0.0
    %166 = vmatmul.mubr.f32.gmra.mrb[0].mxu0 %v96
    %v167 = vpop.f32.mrb[0].mxu0
    %v168 = vadd.f32 %v92, %v167
    %v169 = vpop.f32.mrb[0].mxu0
    %170 = vmatprep.mubr.f32.mxu0 0.0
    %171 = vmatmul.mubr.f32.gmra.mrb[0].mxu0 %v99
    %v172 = vpop.f32.mrb[0].mxu0
    %v173 = vadd.f32 %v92, %v172
    %v174 = vpop.f32.mrb[0].mxu0
    %175 = vdwg.mxu0
    %v176 = vmax.f32 %v168, 0.0
    %v177 = vmax.f32 %v173, 0.0
    %v178 = vld [vmem:[#allocation7] sm:$0xff]
    %v179 = vld [vmem:[#allocation7 + $0x8] sm:$0xff]
    %v180 = vld [vmem:[#allocation7 + $0x10] sm:$0xff]
    %v181 = vld [vmem:[#allocation7 + $0x18] sm:$0xff]
    %v182 = vld [vmem:[%s4] sm:$0x1]
    %v184 = vlaneseq
    %v185 = vshrl.u32 %v184, 7
    %v186 = vsub.s32 0, %v185
    %v187 = vrot.slane %v182, %v186
    %v190 = vsel %vm94, %v176, 0
    %v193 = vsel %vm94, %v177, 0
    %195 = vmatprep.subr.mxu0 0.0
    %196 = vmatpush1.msra.mxu0 %v178
    %197 = vmatprep.subr.mxu0 0.0
    %198 = vmatpush1.msra.mxu0 %v179
    %199 = vmatprep.subr.mxu0 0.0
    %200 = vmatpush1.msra.mxu0 %v180
    %201 = vmatprep.subr.mxu0 0.0
    %202 = vmatpush1.msra.mxu0 %v181
    %203 = vmatprep.subr.mxu0 0.0
    %204 = vmatpush1.msra.mxu0 0.0
    %205 = vmatprep.subr.mxu0 0.0
    %206 = vmatpush1.msra.mxu0 0.0
    %207 = vmatprep.subr.mxu0 0.0
    %208 = vmatpush1.msra.mxu0 0.0
    %209 = vmatprep.subr.mxu0 0.0
    %210 = vmatpush1.msra.mxu0 0.0
    %211 = vmatprep.subr.mxu0 0.0
    %212 = vmatpush1.msra.mxu0 0.0
    %213 = vmatprep.subr.mxu0 0.0
    %214 = vmatpush1.msra.mxu0 0.0
    %215 = vmatprep.subr.mxu0 0.0
    %216 = vmatpush1.msra.mxu0 0.0
    %217 = vmatprep.subr.mxu0 0.0
    %218 = vmatpush1.msra.mxu0 0.0
    %219 = vmatprep.subr.mxu0 0.0
    %220 = vmatpush1.msra.mxu0 0.0
    %221 = vmatprep.subr.mxu0 0.0
    %222 = vmatpush1.msra.mxu0 0.0
    %223 = vmatprep.subr.mxu0 0.0
    %224 = vmatpush1.msra.mxu0 0.0
    %225 = vmatprep.subr.mxu0 0.0
    %226 = vmatpush1.msra.mxu0 0.0
    %227 = vmatprep.subr.mxu0 0.0
    %228 = vmatpush1.msra.mxu0 0.0
    %229 = vmatprep.subr.mxu0 0.0
    %230 = vmatpush1.msra.mxu0 0.0
    %231 = vmatprep.subr.mxu0 0.0
    %232 = vmatpush1.msra.mxu0 0.0
    %233 = vmatprep.subr.mxu0 0.0
    %234 = vmatpush1.msra.mxu0 0.0
    %235 = vmatprep.subr.mxu0 0.0
    %236 = vmatpush1.msra.mxu0 0.0
    %237 = vmatprep.subr.mxu0 0.0
    %238 = vmatpush1.msra.mxu0 0.0
    %239 = vmatprep.subr.mxu0 0.0
    %240 = vmatpush1.msra.mxu0 0.0
    %241 = vmatprep.subr.mxu0 0.0
    %242 = vmatpush1.msra.mxu0 0.0
    %243 = vmatprep.subr.mxu0 0.0
    %244 = vmatpush1.msra.mxu0 0.0
    %245 = vmatprep.subr.mxu0 0.0
    %246 = vmatpush1.msra.mxu0 0.0
    %247 = vmatprep.subr.mxu0 0.0
    %248 = vmatpush1.msra.mxu0 0.0
    %249 = vmatprep.subr.mxu0 0.0
    %250 = vmatpush1.msra.mxu0 0.0
    %251 = vmatprep.subr.mxu0 0.0
    %252 = vmatpush1.msra.mxu0 0.0
    %253 = vmatprep.subr.mxu0 0.0
    %254 = vmatpush1.msra.mxu0 0.0
    %255 = vmatprep.subr.mxu0 0.0
    %256 = vmatpush1.msra.mxu0 0.0
    %257 = vmatprep.subr.mxu0 0.0
    %258 = vmatpush1.msra.mxu0 0.0
    %259 = vmatprep.mubr.f32.mxu0 0.0
    %260 = vmatmul.mubr.f32.gmra.mrb[0].mxu0 %v190
    %v261 = vpop.f32.mrb[0].mxu0
    %v262 = vadd.f32 %v187, %v261
    %v263 = vpop.f32.mrb[0].mxu0
    %264 = vmatprep.mubr.f32.mxu0 0.0
    %265 = vmatmul.mubr.f32.gmra.mrb[0].mxu0 %v193
    %v266 = vpop.f32.mrb[0].mxu0
    %v267 = vadd.f32 %v187, %v266
    %v268 = vpop.f32.mrb[0].mxu0
    %269 = vdwg.mxu0
    %v270 = vld [vmem:[#allocation8] sm:$0xff]
    %v271 = vld [vmem:[#allocation8 + $0x8] sm:$0xff]
    %v272 = vld [vmem:[#allocation8 + $0x10] sm:$0xff]
    %v273 = vld [vmem:[#allocation8 + $0x18] sm:$0xff]
    %v275 = vsel %vm94, %v79, 0
    %v278 = vsel %vm94, %v80, 0
    %280 = vmatprep.subr.mxu0 0.0
    %281 = vmatpush1.msra.mxu0 %v270
    %282 = vmatprep.subr.mxu0 0.0
    %283 = vmatpush1.msra.mxu0 %v271
    %284 = vmatprep.subr.mxu0 0.0
    %285 = vmatpush1.msra.mxu0 %v272
    %286 = vmatprep.subr.mxu0 0.0
    %287 = vmatpush1.msra.mxu0 %v273
    %288 = vmatprep.subr.mxu0 0.0
    %289 = vmatpush1.msra.mxu0 0.0
    %290 = vmatprep.subr.mxu0 0.0
    %291 = vmatpush1.msra.mxu0 0.0
    %292 = vmatprep.subr.mxu0 0.0
    %293 = vmatpush1.msra.mxu0 0.0
    %294 = vmatprep.subr.mxu0 0.0
    %295 = vmatpush1.msra.mxu0 0.0
    %296 = vmatprep.subr.mxu0 0.0
    %297 = vmatpush1.msra.mxu0 0.0
    %298 = vmatprep.subr.mxu0 0.0
    %299 = vmatpush1.msra.mxu0 0.0
    %300 = vmatprep.subr.mxu0 0.0
    %301 = vmatpush1.msra.mxu0 0.0
    %302 = vmatprep.subr.mxu0 0.0
    %303 = vmatpush1.msra.mxu0 0.0
    %304 = vmatprep.subr.mxu0 0.0
    %305 = vmatpush1.msra.mxu0 0.0
    %306 = vmatprep.subr.mxu0 0.0
    %307 = vmatpush1.msra.mxu0 0.0
    %308 = vmatprep.subr.mxu0 0.0
    %309 = vmatpush1.msra.mxu0 0.0
    %310 = vmatprep.subr.mxu0 0.0
    %311 = vmatpush1.msra.mxu0 0.0
    %312 = vmatprep.subr.mxu0 0.0
    %313 = vmatpush1.msra.mxu0 0.0
    %314 = vmatprep.subr.mxu0 0.0
    %315 = vmatpush1.msra.mxu0 0.0
    %316 = vmatprep.subr.mxu0 0.0
    %317 = vmatpush1.msra.mxu0 0.0
    %318 = vmatprep.subr.mxu0 0.0
    %319 = vmatpush1.msra.mxu0 0.0
    %320 = vmatprep.subr.mxu0 0.0
    %321 = vmatpush1.msra.mxu0 0.0
    %322 = vmatprep.subr.mxu0 0.0
    %323 = vmatpush1.msra.mxu0 0.0
    %324 = vmatprep.subr.mxu0 0.0
    %325 = vmatpush1.msra.mxu0 0.0
    %326 = vmatprep.subr.mxu0 0.0
    %327 = vmatpush1.msra.mxu0 0.0
    %328 = vmatprep.subr.mxu0 0.0
    %329 = vmatpush1.msra.mxu0 0.0
    %330 = vmatprep.subr.mxu0 0.0
    %331 = vmatpush1.msra.mxu0 0.0
    %332 = vmatprep.subr.mxu0 0.0
    %333 = vmatpush1.msra.mxu0 0.0
    %334 = vmatprep.subr.mxu0 0.0
    %335 = vmatpush1.msra.mxu0 0.0
    %336 = vmatprep.subr.mxu0 0.0
    %337 = vmatpush1.msra.mxu0 0.0
    %338 = vmatprep.subr.mxu0 0.0
    %339 = vmatpush1.msra.mxu0 0.0
    %340 = vmatprep.subr.mxu0 0.0
    %341 = vmatpush1.msra.mxu0 0.0
    %342 = vmatprep.subr.mxu0 0.0
    %343 = vmatpush1.msra.mxu0 0.0
    %344 = vmatprep.mubr.f32.mxu0 0.0
    %345 = vmatmul.mubr.f32.gmra.mrb[0].mxu0 %v275
    %v346 = vpop.f32.mrb[0].mxu0
    %v347 = vadd.f32 %v262, %v346
    %v348 = vpop.f32.mrb[0].mxu0
    %349 = vmatprep.mubr.f32.mxu0 0.0
    %350 = vmatmul.mubr.f32.gmra.mrb[0].mxu0 %v278
    %v351 = vpop.f32.mrb[0].mxu0
    %v352 = vadd.f32 %v267, %v351
    %v353 = vpop.f32.mrb[0].mxu0
    %354 = vdwg.mxu0
    %vm355 = vcmask 523264
    %356 = vst.msk [vmem:[#allocation10] sm:$0xff] %vm355, %v347
    %357 = vst.msk [vmem:[#allocation10 + $0x8] sm:$0xff] %vm355, %v352
    // Predicated region
    $region42: #{tpu_custom_call.1} parent=1 // pred_check
      _
    $region43: #{tpu_custom_call.1} parent=1 // pred_check_branch
      %359 = sbr.rel (0) target = $region45
    $region44: #{tpu_custom_call.1} parent=1 // pred_region
      %s361 = ssub.s32 256, 256
      %362 = vsyncadd [#allocation4], %s361
      %s363 = sshll.u32 [#allocation10], 4
      %s364 = int_to_ptr.vmem [resolvable:$true] %s363
      %369 = dma.vmem_to_hbm [thread:$0]  %s364, 256, %s6, [#allocation4], 128, 128, 8
    $region45: #{tpu_custom_call.1} parent=1 // pred_fallthru
      _
    // Predicated region
    $region46: #{tpu_custom_call.1} parent=1 // pred_check
      _
    $region47: #{tpu_custom_call.1} parent=1 // pred_check_branch
      %371 = sbr.rel (0) target = $region49
    $region48: #{tpu_custom_call.1} parent=1 // pred_region
      %372 = dma.done [#allocation4], 256
    $region49: #{tpu_custom_call.1} parent=1 // pred_fallthru
      _
    %373 = vsyncpa [#allocation3], 1
    %374 = vsyncpa [#allocation6], 1
    %375 = vsyncpa [#allocation9], 1
    %376 = vsyncpa [#allocation4], 1

</llo_original>
